<compile_context>
chip_gen: v7x
topology: tpu7x:2x2x1
jax: 0.10.0
libtpu: 0.0.40
codegen_flags: <defaults>
</compile_context>

<pallas_src>
import functools

import jax
import jax.numpy as jnp
from jax.experimental import pallas as pl
from jax.experimental.pallas import tpu as pltpu

_LOG_CLAMP = -100.0                 # torch.nn.BCELoss clamps log terms at -100
_TILE_BYTES = 4 * 1024 * 1024       # target VMEM bytes per input tile (per pipeline buffer)
_VMEM_LIMIT = 32 * 1024 * 1024      # raise v5e's 16 MiB scoped default; == v6e/v7x default


def _round_up(x: int, m: int) -> int:
    return ((x + m - 1) // m) * m


def _pick_block(total: int, target: int, unit: int) -> int:
    """Pick a block extent along one axis.

    Multiple of `unit` (8 for sublanes / 128 for lanes) unless the full extent is
    smaller; sized near `target`; capped at ~half the extent so the 'parallel' grid
    keeps >= 2 steps (v7x has 2 TensorCores per chip)."""
    if total <= unit:
        return total                                    # full-extent block (exempt from unit rule)
    blk = max(unit, (target // unit) * unit)
    if total >= 2 * unit:
        half = _round_up((total + 1) // 2, unit)
        blk = min(blk, half)
    return min(blk, _round_up(total, unit))


# ----------------------------------------------------------------------------
# Kernel 1: BCE loss (multitask approach), tiled over rows of a lane-dense view.
#   inputs : probs (R, L) float (any float dtype), targets (R, L) float/int8
#   output : per-tile partial sums in (num_tiles, 8, 128); final mean done outside.
# ----------------------------------------------------------------------------
def _bce_partial_kernel(p_ref, t_ref, o_ref, *, tile_rows, total_rows, one_log, needs_mask):
    p = p_ref[...].astype(jnp.float32)          # (TR, L)
    t = t_ref[...].astype(jnp.float32)          # (TR, L)

    if one_log:
        # Hard {0,1} targets: one EUP log per element instead of two (exact for such targets).
        chosen = jnp.where(t > 0.5, p, 1.0 - p)
        elem = -jnp.maximum(jnp.log(chosen), _LOG_CLAMP)
    else:
        # General (soft-target) BCE, matches torch.nn.BCELoss exactly.
        log_p = jnp.maximum(jnp.log(p), _LOG_CLAMP)
        log_1mp = jnp.maximum(jnp.log(1.0 - p), _LOG_CLAMP)
        elem = -(t * log_p + (1.0 - t) * log_1mp)

    if needs_mask:
        # Remainder tile: drop padded rows with a select (not a multiply), so garbage/NaN
        # in the out-of-bounds region can never leak into the sum.
        i = pl.program_id(0)
        row = jax.lax.broadcasted_iota(jnp.int32, elem.shape, 0) + i * tile_rows
        elem = jnp.where(row < total_rows, elem, 0.0)

    # Two-stage reduce (per-lane partials, then cross-lane) keeps f32 accumulation error
    # small even for multi-MiB tiles; one lane-dense (unmasked) store per grid step.
    partial = jnp.sum(jnp.sum(elem, axis=0, keepdims=True))
    o_ref[...] = jnp.zeros_like(o_ref) + partial


def bce_loss_pallas(probs: jnp.ndarray, targets: jnp.ndarray,
                    *, binary_targets=None) -> jnp.ndarray:
    """Mean BCE over all elements of `probs` (probabilities in (0,1)).

    Pass probs/targets in their *native* dtypes (bf16 probs, int8/bool multi-hot targets
    straight from the pipeline): they are streamed as-is and cast to f32 in-kernel.
    binary_targets=None auto-selects the single-log fast path for integer/bool targets
    and the exact two-log torch.nn.BCELoss path for float targets.
    """
    assert probs.ndim == 2 and probs.shape == targets.shape
    B, C = probs.shape
    total = B * C

    if targets.dtype == jnp.bool_:
        targets = targets.astype(jnp.int8)
    if binary_targets is None:
        binary_targets = bool(jnp.issubdtype(targets.dtype, jnp.integer))

    # Lane-dense view when B*C factors into a multiple-of-128 lane width (free reshape
    # for contiguous arrays); otherwise fall back to (B, C) row blocks (lane-padded in
    # VMEM but identical math).
    lane = next((l for l in (512, 256, 128) if total % l == 0), None)
    if lane is not None:
        p2 = probs.reshape(total // lane, lane)
        t2 = targets.reshape(total // lane, lane)
    else:
        p2, t2, lane = probs, targets, C

    R = p2.shape[0]
    vmem_per_row = _round_up(lane, 128) * 4            # conservative f32 VMEM estimate/row
    tm = _pick_block(R, max(8, _TILE_BYTES // vmem_per_row), 8)
    grid = pl.cdiv(R, tm)
    needs_mask = (grid * tm != R)

    kernel = functools.partial(_bce_partial_kernel, tile_rows=tm, total_rows=R,
                               one_log=binary_targets, needs_mask=needs_mask)

    partials = pl.pallas_call(
        kernel,
        out_shape=jax.ShapeDtypeStruct((grid, 8, 128), jnp.float32),
        grid=(grid,),
        in_specs=[
            pl.BlockSpec((tm, lane), lambda i: (i, 0)),   # probabilities (native dtype)
            pl.BlockSpec((tm, lane), lambda i: (i, 0)),   # targets (native dtype)
        ],
        out_specs=pl.BlockSpec((1, 8, 128), lambda i: (i, 0, 0)),
        compiler_params=pltpu.CompilerParams(
            dimension_semantics=("parallel",),
            vmem_limit_bytes=_VMEM_LIMIT,
        ),
    )(p2, t2)

    return jnp.sum(partials[:, 0, 0]) / (B * C)


# ----------------------------------------------------------------------------
# Kernel 2: averaged per-branch cross-entropy (multibranch approach).
#   logits : (A, C, B) float  -- batch lane-dense, classes on sublanes
#   targets: (A, B)    int    -- class index per branch & batch element
#   total_loss = (1/A) * sum_a mean_b CE = mean over (A, B) of -log_softmax[target]
# ----------------------------------------------------------------------------
def _ce_partial_kernel(logits_ref, tgt_ref, o_ref, *, tile_cols, total_cols, needs_mask):
    logits = logits_ref[...].astype(jnp.float32)     # (A, C, TB)
    tgt = tgt_ref[...].astype(jnp.int32)             # (A, TB)

    # Numerically-stable log-sum-exp over the class axis (sublane axis, size C).
    # TODO(synk): on v7x (EUP-bound) pack two C=4 branches per 8-sublane tile and do two
    # segmented 4-sublane reductions to halve exp/log vreg pushes (needs bundle-dump check).
    m = jnp.max(logits, axis=1, keepdims=True)                               # (A, 1, TB)
    lse = m + jnp.log(jnp.sum(jnp.exp(logits - m), axis=1, keepdims=True))   # (A, 1, TB)

    # Gather the target logit with a one-hot select (no full log-softmax materialized).
    cls_iota = jax.lax.broadcasted_iota(jnp.int32, logits.shape, 1)
    picked = jnp.sum(jnp.where(cls_iota == tgt[:, None, :], logits, 0.0), axis=1)  # (A, TB)
    nll = lse[:, 0, :] - picked                                              # (A, TB)

    if needs_mask:
        i = pl.program_id(0)
        col = jax.lax.broadcasted_iota(jnp.int32, nll.shape, 1) + i * tile_cols
        nll = jnp.where(col < total_cols, nll, 0.0)

    partial = jnp.sum(jnp.sum(nll, axis=0, keepdims=True))
    o_ref[...] = jnp.zeros_like(o_ref) + partial


def multibranch_ce_loss_pallas(branch_logits, targets: jnp.ndarray,
                               *, stacked_layout: str = "ACB") -> jnp.ndarray:
    """(1/A) * sum_a mean_b CrossEntropy(branch_a_logits, targets[:, a]).

    Preferred input: a single pre-stacked (A, C, B) array (zero relayout in HBM -- have
    the model emit it directly).  A list of A (B, C) arrays, or a stacked (A, B, C) array
    (stacked_layout="ABC"), is also accepted but costs one full relayout pass of the
    logits before the kernel.  Logits may be bf16; compute is f32 in-kernel.
    """
    if isinstance(branch_logits, (list, tuple)):
        # One relayout pass (unavoidable for list input); prefer pre-stacked (A, C, B).
        logits_acb = jnp.stack([jnp.transpose(b) for b in branch_logits], axis=0)
    elif stacked_layout == "ABC":
        logits_acb = jnp.transpose(branch_logits, (0, 2, 1))
    else:
        logits_acb = branch_logits                                           # (A, C, B)
    A, C, B = logits_acb.shape
    tgt_ab = jnp.transpose(targets).astype(jnp.int32)                        # (A, B), tiny

    vmem_per_col = A * _round_up(C, 8) * 4             # conservative f32 VMEM estimate/col
    tb = _pick_block(B, max(128, _TILE_BYTES // vmem_per_col), 128)
    grid = pl.cdiv(B, tb)
    needs_mask = (grid * tb != B)

    kernel = functools.partial(_ce_partial_kernel, tile_cols=tb, total_cols=B,
                               needs_mask=needs_mask)

    partials = pl.pallas_call(
        kernel,
        out_shape=jax.ShapeDtypeStruct((grid, 8, 128), jnp.float32),
        grid=(grid,),
        in_specs=[
            pl.BlockSpec((A, C, tb), lambda i: (0, 0, i)),
            pl.BlockSpec((A, tb), lambda i: (0, i)),
        ],
        out_specs=pl.BlockSpec((1, 8, 128), lambda i: (i, 0, 0)),
        compiler_params=pltpu.CompilerParams(
            dimension_semantics=("parallel",),
            vmem_limit_bytes=_VMEM_LIMIT,
        ),
    )(logits_acb, tgt_ab)

    # (1/A) * sum_a mean_b == mean over all (A, B) elements.
    return jnp.sum(partials[:, 0, 0]) / (A * B)


# ----------------------------------------------------------------------------
# Thin wrapper mirroring the PyTorch module interface.
# ----------------------------------------------------------------------------
class VLSP2018Loss:
    def __init__(self, approach: str = "multitask", num_aspects: int = 34,
                 binary_targets=None):
        if approach not in ("multitask", "multibranch"):
            raise ValueError(f"Unsupported approach: {approach}")
        self.approach = approach
        self.num_aspects = num_aspects
        # None = auto (int/bool targets -> single-log fast path; float -> exact BCELoss).
        self.binary_targets = binary_targets

    def __call__(self, outputs, targets):
        if self.approach == "multitask":
            return bce_loss_pallas(outputs, targets, binary_targets=self.binary_targets)
        else:  # multibranch
            return multibranch_ce_loss_pallas(outputs, targets)


# ----------------------------------------------------------------------------
# Pure-JAX references (sanity checks only).
# ----------------------------------------------------------------------------
def _bce_ref(p, t):
    lp = jnp.maximum(jnp.log(p), _LOG_CLAMP)
    l1 = jnp.maximum(jnp.log(1.0 - p), _LOG_CLAMP)
    return jnp.mean(-(t * lp + (1.0 - t) * l1))


def _ce_ref(branch_logits, targets):
    total = 0.0
    for i, lg in enumerate(branch_logits):
        logp = jax.nn.log_softmax(lg.astype(jnp.float32), axis=-1)
        picked = jnp.take_along_axis(logp, targets[:, i][:, None].astype(jnp.int32), axis=-1)
        total = total + jnp.mean(-picked)
    return total / len(branch_logits)


if __name__ == "__main__":
    key = jax.random.PRNGKey(0)
    B = 16           # batch
    A = 8            # num aspects / branches (small synthetic instead of 34)
    C = 4            # num classes per branch (none/pos/neg/neu)

    k1, k2, k3, k4 = jax.random.split(key, 4)

    # ---- multitask: probabilities + binary targets, shape (B, A*C) ----
    probs = jax.nn.sigmoid(jax.random.normal(k1, (B, A * C), dtype=jnp.float32))
    bin_targets_i8 = (jax.random.uniform(k2, (B, A * C)) > 0.5).astype(jnp.int8)
    bin_targets_f32 = bin_targets_i8.astype(jnp.float32)

    mt_loss_fn = VLSP2018Loss(approach="multitask", num_aspects=A)
    mt_ref = _bce_ref(probs, bin_targets_f32)
    mt_fast = jax.block_until_ready(mt_loss_fn(probs, bin_targets_i8))    # int8 -> one-log path
    mt_exact = jax.block_until_ready(mt_loss_fn(probs, bin_targets_f32))  # f32  -> exact BCELoss
    assert jnp.allclose(mt_fast, mt_ref, rtol=1e-5, atol=1e-5), (mt_fast, mt_ref)
    assert jnp.allclose(mt_exact, mt_ref, rtol=1e-5, atol=1e-5), (mt_exact, mt_ref)

    # ---- multibranch: list of A logit tensors (B, C) + integer targets (B, A) ----
    branch_logits = [
        jax.random.normal(jax.random.fold_in(k3, i), (B, C), dtype=jnp.float32)
        for i in range(A)
    ]
    int_targets = jax.random.randint(k4, (B, A), 0, C, dtype=jnp.int32)

    mb_loss_fn = VLSP2018Loss(approach="multibranch", num_aspects=A)
    mb_loss = jax.block_until_ready(mb_loss_fn(branch_logits, int_targets))
    mb_ref = _ce_ref(branch_logits, int_targets)
    assert jnp.allclose(mb_loss, mb_ref, rtol=1e-5, atol=1e-5), (mb_loss, mb_ref)

    # Pre-stacked (A, C, B) fast path (zero wrapper-side relayout).
    logits_acb = jnp.stack([jnp.transpose(b) for b in branch_logits], axis=0)
    mb_loss2 = jax.block_until_ready(multibranch_ce_loss_pallas(logits_acb, int_targets))
    assert jnp.allclose(mb_loss2, mb_ref, rtol=1e-5, atol=1e-5), (mb_loss2, mb_ref)

    # ---- multi-tile + remainder-masking path (grid >= 2, non-divisible batch) ----
    B2 = 1000
    probs2 = jax.nn.sigmoid(jax.random.normal(k1, (B2, A * C), dtype=jnp.float32))
    bin2_i8 = (jax.random.uniform(k2, (B2, A * C)) > 0.5).astype(jnp.int8)
    l2 = jax.block_until_ready(bce_loss_pallas(probs2, bin2_i8))
    assert jnp.allclose(l2, _bce_ref(probs2, bin2_i8.astype(jnp.float32)),
                        rtol=1e-5, atol=1e-5), l2

    branch_logits2 = [
        jax.random.normal(jax.random.fold_in(k3, 100 + i), (B2, C), dtype=jnp.float32)
        for i in range(A)
    ]
    int_targets2 = jax.random.randint(k4, (B2, A), 0, C, dtype=jnp.int32)
    l3 = jax.block_until_ready(multibranch_ce_loss_pallas(branch_logits2, int_targets2))
    assert jnp.allclose(l3, _ce_ref(branch_logits2, int_targets2), rtol=1e-5, atol=1e-5), l3

    print("KERNEL_OK")
</pallas_src>

<mosaic_0001>
module attributes {stable_mosaic.version = 11 : i64} {
  func.func @_bce_partial_kernel(%arg0: i32, %arg1: memref<1x512xf32, #tpu.memory_space<vmem>>, %arg2: memref<1x512xi8, #tpu.memory_space<vmem>>, %arg3: memref<1x8x128xf32, #tpu.memory_space<vmem>>) attributes {dimension_semantics = [#tpu.dimension_semantics<parallel>], iteration_bounds = array<i64: 1>, scalar_prefetch = 0 : i64, scratch_operands = 0 : i64, tpu.core_type = #tpu.core_type<tc>, window_params = [{transform_indices = @transform_0, window_bounds = array<i64: 1, 512>}, {transform_indices = @transform_1, window_bounds = array<i64: 1, 512>}, {transform_indices = @transform_2, window_bounds = array<i64: 1, 8, 128>}]} {
    %c0 = arith.constant 0 : index
    %c0_0 = arith.constant 0 : index
    %0 = vector.load %arg1[%c0, %c0_0] : memref<1x512xf32, #tpu.memory_space<vmem>>, vector<1x512xf32>
    %c0_1 = arith.constant 0 : index
    %c0_2 = arith.constant 0 : index
    %1 = vector.load %arg2[%c0_1, %c0_2] : memref<1x512xi8, #tpu.memory_space<vmem>>, vector<1x512xi8>
    %2 = arith.sitofp %1 : vector<1x512xi8> to vector<1x512xf32>
    %cst = arith.constant 5.000000e-01 : f32
    %3 = vector.broadcast %cst : f32 to vector<1x512xf32>
    %4 = arith.cmpf ogt, %2, %3 : vector<1x512xf32>
    %cst_3 = arith.constant 1.000000e+00 : f32
    %5 = vector.broadcast %cst_3 : f32 to vector<1x512xf32>
    %6 = arith.subf %5, %0 : vector<1x512xf32>
    %7 = arith.select %4, %0, %6 : vector<1x512xi1>, vector<1x512xf32>
    %8 = math.log %7 : vector<1x512xf32>
    %cst_4 = arith.constant -1.000000e+02 : f32
    %9 = vector.broadcast %cst_4 : f32 to vector<1x512xf32>
    %10 = arith.maximumf %8, %9 : vector<1x512xf32>
    %cst_5 = arith.constant 0.000000e+00 : f32
    %11 = vector.broadcast %cst_5 : f32 to vector<1x512xf32>
    %12 = arith.subf %11, %10 : vector<1x512xf32>
    %cst_6 = arith.constant dense<0.000000e+00> : vector<512xf32>
    %13 = vector.multi_reduction <add>, %12, %cst_6 [0] : vector<1x512xf32> to vector<512xf32>
    %14 = vector.shape_cast %13 : vector<512xf32> to vector<1x512xf32>
    %15 = vector.shape_cast %14 : vector<1x512xf32> to vector<1x1x512xf32>
    %cst_7 = arith.constant dense<0.000000e+00> : vector<1xf32>
    %16 = vector.multi_reduction <add>, %15, %cst_7 [1, 2] : vector<1x1x512xf32> to vector<1xf32>
    %17 = vector.shape_cast %16 : vector<1xf32> to vector<1x1x1xf32>
    %18 = vector.extract %17[0, 0, 0] : f32 from vector<1x1x1xf32>
    %cst_8 = arith.constant 0.000000e+00 : f32
    %19 = vector.broadcast %cst_8 : f32 to vector<1x8x128xf32>
    %20 = vector.broadcast %18 : f32 to vector<1x8x128xf32>
    %21 = arith.addf %19, %20 : vector<1x8x128xf32>
    %c0_9 = arith.constant 0 : index
    %c0_10 = arith.constant 0 : index
    %c0_11 = arith.constant 0 : index
    %22 = vector.load %arg3[%c0_9, %c0_10, %c0_11] : memref<1x8x128xf32, #tpu.memory_space<vmem>>, vector<1x8x128xf32>
    tpu.vector_store %arg3[%c0_9, %c0_10, %c0_11], %21 {strides = array<i32>} : memref<1x8x128xf32, #tpu.memory_space<vmem>>, vector<1x8x128xf32>,
    return
  }
  func.func @transform_0(%arg0: i32) -> (i32, i32) {
    %c0_i32 = arith.constant 0 : i32
    %c0_i32_0 = arith.constant 0 : i32
    return %arg0, %c0_i32 : i32, i32
  }
  func.func @transform_1(%arg0: i32) -> (i32, i32) {
    %c0_i32 = arith.constant 0 : i32
    %c0_i32_0 = arith.constant 0 : i32
    return %arg0, %c0_i32 : i32, i32
  }
  func.func @transform_2(%arg0: i32) -> (i32, i32, i32) {
    %c0_i32 = arith.constant 0 : i32
    %c0_i32_0 = arith.constant 0 : i32
    %c0_i32_1 = arith.constant 0 : i32
    return %arg0, %c0_i32, %c0_i32_0 : i32, i32, i32
  }
}

</mosaic_0001>

<llo_original>
// kernel: tpu_custom_call.1
$region0: #{tpu_custom_call.1}
  #allocation0 [shape = 'u32[]', space=smem, size = 0x4, offset = 0x4, fixed_abs, tag = 'smem constant byte address 0x4 - core index']
  #allocation1 [shape = 'u32[144,128]{1,0:T(1,128)}', space=vmem, size = 0x12000, scoped, tag = 'internal scratch']
  %s0 = inlined_call_operand.hbm [shape: f32[1,512], index: 0, kind: input, shape index: {}]
  %s1 = inlined_call_operand.hbm [shape: s8[1,512], index: 1, kind: input, shape index: {}]
  %s2 = inlined_call_operand.hbm [shape: f32[1,8,128], index: 2, kind: output, shape index: {}]
  %s3 = sld [smem:[#allocation0]]
  $region26: #{tpu_custom_call.1} parent=0
    _
  %s5 = ssub.s32 1, %s3
  %s6 = scalar_select 0, %s5, %s3
  $region1: #{tpu_custom_call.1} parent=0
    #allocation2 [shape = 'u8[2048]{0}', space=vmem, size = 0x800, scoped, tag = 'input window, operand 0, single buffered']
    #allocation3 [shape = 's32[1]{0}', space=sflag, size = 0x4, scoped, tag = 'scoped memory for tpu_custom_call.1']
    #allocation4 [shape = 's32[1]{0}', space=sflag, size = 0x4, scoped, tag = 'scoped memory for tpu_custom_call.1']
    #allocation5 [shape = 'u8[2048]{0}', space=vmem, size = 0x800, scoped, tag = 'input window, operand 1, single buffered']
    #allocation6 [shape = 's32[1]{0}', space=sflag, size = 0x4, scoped, tag = 'scoped memory for tpu_custom_call.1']
    #allocation7 [shape = 'u8[4096]{0}', space=vmem, size = 0x1000, scoped, tag = 'output window, operand 0, single buffered']
    %7 = vsyncpa [#allocation3], 0
    %8 = vsyncpa [#allocation6], 0
    %9 = vsyncpa [#allocation4], 0
    // Predicated region
    $region2: #{tpu_custom_call.1} parent=1 // pred_check
      _
    $region3: #{tpu_custom_call.1} parent=1 // pred_check_branch
      %11 = sbr.rel (0) target = $region5
    $region4: #{tpu_custom_call.1} parent=1 // pred_region
      %s13 = ssub.s32 64, 64
      %14 = vsyncadd [#allocation3], %s13
      %s16 = sshll.u32 [#allocation2], 4
      %s17 = int_to_ptr.vmem [resolvable:$true] %s16
      %19 = dma.hbm_to_vmem [thread:$0]  %s0, 64, %s17, [#allocation3]
    $region5: #{tpu_custom_call.1} parent=1 // pred_fallthru
      _
    // Predicated region
    $region6: #{tpu_custom_call.1} parent=1 // pred_check
      _
    $region7: #{tpu_custom_call.1} parent=1 // pred_check_branch
      %21 = sbr.rel (0) target = $region9
    $region8: #{tpu_custom_call.1} parent=1 // pred_region
      %s23 = ssub.s32 64, 64
      %24 = vsyncadd [#allocation6], %s23
      %s26 = sshll.u32 [#allocation5], 4
      %s27 = int_to_ptr.vmem [resolvable:$true] %s26
      %29 = dma.hbm_to_vmem [thread:$0]  %s1, 64, %s27, [#allocation6]
    $region9: #{tpu_custom_call.1} parent=1 // pred_fallthru
      _
    // Predicated region
    $region10: #{tpu_custom_call.1} parent=1 // pred_check
      _
    $region11: #{tpu_custom_call.1} parent=1 // pred_check_branch
      %31 = sbr.rel (0) target = $region13
    $region12: #{tpu_custom_call.1} parent=1 // pred_region
      %32 = dma.done [#allocation3], 64
    $region13: #{tpu_custom_call.1} parent=1 // pred_fallthru
      _
    // Predicated region
    $region14: #{tpu_custom_call.1} parent=1 // pred_check
      _
    $region15: #{tpu_custom_call.1} parent=1 // pred_check_branch
      %34 = sbr.rel (0) target = $region17
    $region16: #{tpu_custom_call.1} parent=1 // pred_region
      %35 = dma.done [#allocation6], 64
    $region17: #{tpu_custom_call.1} parent=1 // pred_fallthru
      _
    %v36 = vld [vmem:[#allocation2] sm:$0xf]
    %v37 = vld [vmem:[#allocation5] sm:$0xf]
    %v38 = vunpack.c.0.s8 %v37
    %v39 = vunpack.c.1.s8 %v37
    %v40 = vcvt.s32.f32 %v38
    %v41 = vcvt.s32.f32 %v39
    %vm42 = vcmp.gt.f32.partialorder %v40, 0.5
    %vm43 = vcmp.gt.f32.partialorder %v41, 0.5
    %v44 = vsub.f32 1.0, %v36
    %v47 = vunpack.c.l.s4 286326784
    %v48 = vunpack.c.0.s8 %v47
    %v49 = vlaneseq
    %v50 = vshrl.u32 %v49, 7
    %v51 = vsub.s32 %v48, %v50
    %v52 = vrot.slane %v36, %v51
    %v54 = vunpack.c.l.s4 858989090
    %v55 = vunpack.c.0.s8 %v54
    %v56 = vlaneseq
    %v57 = vshrl.u32 %v56, 7
    %v58 = vsub.s32 %v55, %v57
    %v59 = vrot.slane %v36, %v58
    %v64 = vunpack.c.l.s4 286326784
    %v65 = vunpack.c.0.s8 %v64
    %v66 = vlaneseq
    %v67 = vshrl.u32 %v66, 7
    %v68 = vsub.s32 %v65, %v67
    %v69 = vrot.slane %v44, %v68
    %v71 = vunpack.c.l.s4 858989090
    %v72 = vunpack.c.0.s8 %v71
    %v73 = vlaneseq
    %v74 = vshrl.u32 %v73, 7
    %v75 = vsub.s32 %v72, %v74
    %v76 = vrot.slane %v44, %v75
    %v79 = vsel %vm42, %v52, %v69
    %v80 = vsel %vm43, %v59, %v76
    %v81 = vlog2.pop %v79
    %v82 = vmul.f32 %v81, 0.6931472
    %v83 = vlog2.pop %v80
    %v84 = vmul.f32 %v83, 0.6931472
    %v85 = vmax.f32 %v82, -100.0
    %v86 = vmax.f32 %v84, -100.0
    %v87 = vsub.f32 0.0, %v85
    %v88 = vsub.f32 0.0, %v86
    %v89 = vadd.f32 %v87, 0.0
    %v90 = vadd.f32 %v88, 0.0
    %v93 = vlaneseq
    %v94 = vshrl.u32 %v93, 7
    %v95 = vsub.s32 0, %v94
    %v96 = vrot.slane %v89, %v95
    %v97 = vlaneseq
    %v98 = vshrl.u32 %v97, 7
    %v99 = vsub.s32 4, %v98
    %v100 = vrot.slane %v89, %v99
    %v101 = vlaneseq
    %v102 = vshrl.u32 %v101, 7
    %v103 = vsub.s32 0, %v102
    %v104 = vrot.slane %v90, %v103
    %v105 = vlaneseq
    %v106 = vshrl.u32 %v105, 7
    %v107 = vsub.s32 4, %v106
    %v108 = vrot.slane %v90, %v107
    %vm113 = vcmask 1040384
    %v114 = vsel %vm113, %v96, 0.0
    %v115 = vsel %vm113, %v100, 0.0
    %v116 = vadd.f32 %v114, %v115
    %v117 = vsel %vm113, %v104, 0.0
    %v118 = vadd.f32 %v116, %v117
    %v119 = vsel %vm113, %v108, 0.0
    %v120 = vadd.f32 %v118, %v119
    %121 = vadd.xlane.f32.xlu0 %v120
    %v122 = vpop.xlane.xlu0 %121
    %v123 = vrot.slane %v122, 4
    %v124 = vadd.f32 %v122, %v123
    %v125 = vrot.slane %v124, 2
    %v126 = vadd.f32 %v124, %v125
    %v127 = vrot.slane %v126, 1
    %v128 = vadd.f32 %v126, %v127
    %s129 = vtos %v128
    %v130 = vstv %s129
    %v131 = vadd.f32 %v130, 0.0
    %132 = vst [vmem:[#allocation7] sm:$0xff] %v131
    // Predicated region
    $region18: #{tpu_custom_call.1} parent=1 // pred_check
      _
    $region19: #{tpu_custom_call.1} parent=1 // pred_check_branch
      %134 = sbr.rel (0) target = $region21
    $region20: #{tpu_custom_call.1} parent=1 // pred_region
      %s136 = ssub.s32 128, 128
      %137 = vsyncadd [#allocation4], %s136
      %s139 = sshll.u32 [#allocation7], 4
      %s140 = int_to_ptr.vmem [resolvable:$true] %s139
      %142 = dma.vmem_to_hbm [thread:$0]  %s140, 128, %s2, [#allocation4]
    $region21: #{tpu_custom_call.1} parent=1 // pred_fallthru
      _
    // Predicated region
    $region22: #{tpu_custom_call.1} parent=1 // pred_check
      _
    $region23: #{tpu_custom_call.1} parent=1 // pred_check_branch
      %144 = sbr.rel (0) target = $region25
    $region24: #{tpu_custom_call.1} parent=1 // pred_region
      %145 = dma.done [#allocation4], 128
    $region25: #{tpu_custom_call.1} parent=1 // pred_fallthru
      _
    %146 = vsyncpa [#allocation3], 1
    %147 = vsyncpa [#allocation6], 1
    %148 = vsyncpa [#allocation4], 1

</llo_original>
